<compile_context>
chip_gen: v7x
topology: tpu7x:2x2x1
jax: 0.10.0
libtpu: 0.0.40
codegen_flags: <defaults>
</compile_context>

<pallas_src>
import jax
import jax.numpy as jnp
from jax.experimental import pallas as pl
from jax.experimental.pallas import tpu as pltpu

NUM_ACTIONS = 2
_LANES = 128
_VMEM_LIMIT_BYTES = 32 * 1024 * 1024   # safe scoped VMEM limit on v5e/v6e/v7x
_TILE_BYTES_BUDGET = 4 * 1024 * 1024   # per s buffer (x2 double-buffered), padded bytes


def _round_up(x, m):
    return ((x + m - 1) // m) * m


# ----------------------------------------------------------------------------
# Kernels
# ----------------------------------------------------------------------------
def _choose_and_logp_kernel(s_ref, dw_ref, db_ref, act_ref, logp_ref):
    """Fused map(s) -> argmax action + log_prob(action) for one (TB, H) tile.

    Outputs are stored lane-major as (1, TB) blocks (unmasked vector stores);
    the wrapper reshapes them back to (B, 1) / (B,).
    """
    s = s_ref[...].astype(jnp.float32)            # (TB, H); no-op cast for f32 input
    dw = dw_ref[...]                              # (1, H) f32, grid-resident
    db = db_ref[0]                                # scalar bias delta from SMEM

    # delta = logit0 - logit1; VPU multiply + lane reduce (A=2 needs no MXU,
    # no softmax, no gather).  1-D result is lane-major -> lane-dense stores.
    delta = jnp.sum(s * dw, axis=1) + db          # (TB,) f32

    # torch.max(probs, 1)[1]: first index achieving the max -> ties give action 0
    action = (delta < 0.0).astype(jnp.int32)      # (TB,)
    act_ref[...] = action.reshape(1, act_ref.shape[1])

    # Categorical(softmax(logits)).log_prob(argmax) == -softplus(-|delta|)
    logp = -jnp.log1p(jnp.exp(-jnp.abs(delta)))
    logp_ref[...] = logp.reshape(1, logp_ref.shape[1])


def _log_probs_kernel(s_ref, dw_ref, db_ref, act_ref, logp_ref):
    """log_softmax(map(s))[action] for caller-supplied (not necessarily argmax) actions."""
    s = s_ref[...].astype(jnp.float32)            # (TB, H)
    dw = dw_ref[...]                              # (1, H) f32
    db = db_ref[0]
    delta = jnp.sum(s * dw, axis=1) + db          # (TB,)

    act = act_ref[0, :]                           # (TB,) int32, lane-major
    if pl.debug_checks_enabled():
        # torch.distributions.Categorical would raise for actions outside {0,1};
        # here out-of-range actions fall through to the action==1 branch.
        pl.debug_check(jnp.all((act >= 0) & (act < NUM_ACTIONS)),
                       "get_log_probs: action outside {0,1}")

    # log p(a) = -softplus(x), x = -delta for a==0 else +delta (stable form).
    x = jnp.where(act == 0, -delta, delta)
    logp = -(jnp.maximum(x, 0.0) + jnp.log1p(jnp.exp(-jnp.abs(x))))
    logp_ref[...] = logp.reshape(1, logp_ref.shape[1])


# ----------------------------------------------------------------------------
# Wrapper (parameter setup / glue in plain JAX)
# ----------------------------------------------------------------------------
class BaseActorPallas:
    """Pallas port of BaseActor with a deterministic linear+softmax `map` head."""

    def __init__(self, batch_size, history_num, hidden_dim, key,
                 block_b=None, core_parallel=False):
        # buffers from the torch __init__
        self.selected_data = jnp.zeros((batch_size, history_num), jnp.float32)
        self.unselected_data = jnp.zeros((batch_size, history_num), jnp.float32)

        # deterministic params for the `map` policy head (linear -> softmax)
        kw, kb = jax.random.split(key)
        self.w = (jax.random.normal(kw, (hidden_dim, NUM_ACTIONS), jnp.float32)
                  * (1.0 / jnp.sqrt(hidden_dim)))
        self.b = jax.random.normal(kb, (1, NUM_ACTIONS), jnp.float32) * 0.01

        # A=2 delta-form parameters; ALWAYS f32 (no precision loss in delta)
        self.dw = (self.w[:, 0] - self.w[:, 1]).reshape(1, hidden_dim)   # (1, H)
        self.db = (self.b[0, 0] - self.b[0, 1]).reshape(1)               # (1,) -> SMEM

        self.hidden_dim = hidden_dim
        # user override rounded to the 128-lane store granule
        self.block_b = None if block_b is None else max(_LANES, _round_up(block_b, _LANES))

        # "parallel" batch axis; core_parallel=True explicitly shards the grid
        # across the 2 TensorCores on v7x (verify in the trace before enabling).
        sem = pltpu.CORE_PARALLEL if core_parallel else pltpu.PARALLEL
        self._compiler_params = pltpu.CompilerParams(
            dimension_semantics=(sem,),
            vmem_limit_bytes=_VMEM_LIMIT_BYTES,
        )

    # -- tile sizing: biggest TB whose lane-padded tile fits the byte budget ---
    def _block_rows(self, batch, itemsize):
        if self.block_b is not None:
            tb = self.block_b
        else:
            padded_row_bytes = _round_up(self.hidden_dim, _LANES) * itemsize
            tb = max(_LANES,
                     (_TILE_BYTES_BUDGET // padded_row_bytes) // _LANES * _LANES)
        # never more rows than the batch needs (rounded to the 128-lane granule)
        tb = min(tb, _round_up(batch, _LANES))
        return max(_LANES, tb)

    @staticmethod
    def _cost(batch, hidden, s_itemsize, io_extra_bytes):
        return pl.CostEstimate(
            flops=2 * batch * hidden,
            transcendentals=batch,
            bytes_accessed=batch * hidden * s_itemsize + io_extra_bytes)

    # -- fused hot path: choose_action + log_prob(chosen) in ONE pass over s ---
    def choose_action_and_log_probs(self, s):
        B, H = s.shape
        assert H == self.hidden_dim
        itemsize = jnp.dtype(s.dtype).itemsize
        TB = self._block_rows(B, itemsize)

        actions_row, logp_row = pl.pallas_call(
            _choose_and_logp_kernel,
            out_shape=(
                jax.ShapeDtypeStruct((1, B), jnp.int32),      # actions (lane-dense)
                jax.ShapeDtypeStruct((1, B), jnp.float32),    # log-probs (lane-dense)
            ),
            grid=(pl.cdiv(B, TB),),                           # ragged last block OK
            in_specs=[
                pl.BlockSpec((TB, H), lambda i: (i, 0)),             # s tiles (streamed)
                pl.BlockSpec((1, H), lambda i: (0, 0)),              # dw resident
                pl.BlockSpec(memory_space=pltpu.MemorySpace.SMEM),   # db scalar
            ],
            out_specs=(
                pl.BlockSpec((1, TB), lambda i: (0, i)),
                pl.BlockSpec((1, TB), lambda i: (0, i)),
            ),
            compiler_params=self._compiler_params,
            cost_estimate=self._cost(B, H, itemsize, 8 * B + 4 * H + 4),
        )(s, self.dw, self.db)

        actions = actions_row.reshape(B, 1)
        log_probs = logp_row[0, :]
        # batch_action = zeros(B, 2).scatter_(1, actions, 1) -- tiny, built in XLA
        batch_action = jax.nn.one_hot(actions_row[0, :], NUM_ACTIONS, dtype=jnp.float32)
        return batch_action, actions, log_probs

    def choose_action(self, s, is_training=False):
        if is_training:
            # TODO(synk): torch path samples from Categorical(probs); stochastic
            # sampling (pltpu.prng_*) is not implemented -- fail loudly instead
            # of silently returning the deterministic argmax.
            raise NotImplementedError("is_training=True (Categorical sampling)")
        batch_action, actions, _ = self.choose_action_and_log_probs(s)
        return batch_action, actions

    def get_log_probs(self, s, action):
        # action: (B,) or (B,1) int -> (B,) float32 log-probs (arbitrary actions)
        B, H = s.shape
        assert H == self.hidden_dim
        itemsize = jnp.dtype(s.dtype).itemsize
        TB = self._block_rows(B, itemsize)
        act_row = action.reshape(1, B).astype(jnp.int32)      # lane-dense input

        logp_row = pl.pallas_call(
            _log_probs_kernel,
            out_shape=jax.ShapeDtypeStruct((1, B), jnp.float32),
            grid=(pl.cdiv(B, TB),),
            in_specs=[
                pl.BlockSpec((TB, H), lambda i: (i, 0)),
                pl.BlockSpec((1, H), lambda i: (0, 0)),
                pl.BlockSpec(memory_space=pltpu.MemorySpace.SMEM),
                pl.BlockSpec((1, TB), lambda i: (0, i)),
            ],
            out_specs=pl.BlockSpec((1, TB), lambda i: (0, i)),
            compiler_params=self._compiler_params,
            cost_estimate=self._cost(B, H, itemsize, 8 * B + 4 * H + 4),
        )(s, self.dw, self.db, act_row)
        return logp_row[0, :]

    def forward(self, data, need_backward, is_target):
        raise NotImplementedError  # same as the torch base class


# ----------------------------------------------------------------------------
# Reference (plain JAX) for a sanity check
# ----------------------------------------------------------------------------
def _ref(actor, s, action):
    logits = s.astype(jnp.float32) @ actor.w + actor.b
    probs = jax.nn.softmax(logits, axis=-1)
    a = jnp.argmax(probs, axis=-1).astype(jnp.int32)
    one_hot = jax.nn.one_hot(a, NUM_ACTIONS, dtype=jnp.float32)
    logp = jnp.take_along_axis(jax.nn.log_softmax(logits, axis=-1),
                               action.reshape(-1, 1).astype(jnp.int32), axis=1)[:, 0]
    return one_hot, a, logp


if __name__ == "__main__":
    key = jax.random.PRNGKey(0)
    k_param, k_s = jax.random.split(key)

    # small shapes; B deliberately NOT a multiple of the 128-row block so the
    # ragged last block and the multi-step batch grid actually get exercised
    batch_size, history_num, hidden = 300, 4, 32
    actor = BaseActorPallas(batch_size, history_num, hidden, k_param, block_b=128)
    actor_auto = BaseActorPallas(batch_size, history_num, hidden, k_param)  # auto tile

    s = jax.random.normal(k_s, (batch_size, hidden), jnp.float32)

    batch_action, actions, logp_fused = actor.choose_action_and_log_probs(s)
    ba2, acts2 = actor.choose_action(s, is_training=False)
    logp_any = actor.get_log_probs(s, actions[:, 0])
    flipped = (1 - actions[:, 0]).astype(jnp.int32)
    logp_flip = actor.get_log_probs(s, flipped)
    ba3, acts3, logp3 = actor_auto.choose_action_and_log_probs(s)
    jax.block_until_ready((batch_action, actions, logp_fused, ba2, acts2,
                           logp_any, logp_flip, ba3, acts3, logp3))

    ref_ba, ref_a, ref_lp = _ref(actor, s, actions[:, 0])
    _, _, ref_lp_flip = _ref(actor, s, flipped)
    assert jnp.array_equal(actions[:, 0], ref_a)
    assert jnp.array_equal(acts2[:, 0], ref_a)
    assert jnp.array_equal(acts3[:, 0], ref_a)
    assert jnp.allclose(batch_action, ref_ba)
    assert jnp.allclose(ba2, ref_ba)
    assert jnp.allclose(ba3, ref_ba)
    assert jnp.allclose(logp_fused, ref_lp, atol=1e-5, rtol=1e-5)
    assert jnp.allclose(logp3, ref_lp, atol=1e-5, rtol=1e-5)
    assert jnp.allclose(logp_any, ref_lp, atol=1e-5, rtol=1e-5)
    assert jnp.allclose(logp_flip, ref_lp_flip, atol=1e-5, rtol=1e-5)

    print("KERNEL_OK")
</pallas_src>

<mosaic_0001>
module attributes {stable_mosaic.version = 11 : i64} {
  func.func @_choose_and_logp_kernel(%arg0: i32, %arg1: memref<128x32xf32, #tpu.memory_space<vmem>>, %arg2: memref<1x32xf32, #tpu.memory_space<vmem>>, %arg3: memref<1xf32, #tpu.memory_space<smem>>, %arg4: memref<1x128xi32, #tpu.memory_space<vmem>>, %arg5: memref<1x128xf32, #tpu.memory_space<vmem>>) attributes {dimension_semantics = [#tpu.dimension_semantics<parallel>], iteration_bounds = array<i64: 3>, scalar_prefetch = 0 : i64, scratch_operands = 0 : i64, tpu.core_type = #tpu.core_type<tc>, window_params = [{transform_indices = @transform_0, window_bounds = array<i64: 128, 32>}, {pipeline_mode = #tpu.pipeline_mode<synchronous>, transform_indices = @transform_1, window_bounds = array<i64: 1, 32>}, {transform_indices = @transform_2, window_bounds = array<i64: 1>}, {transform_indices = @transform_3, window_bounds = array<i64: 1, 128>}, {transform_indices = @transform_4, window_bounds = array<i64: 1, 128>}]} {
    %c0 = arith.constant 0 : index
    %c0_0 = arith.constant 0 : index
    %0 = vector.load %arg1[%c0, %c0_0] : memref<128x32xf32, #tpu.memory_space<vmem>>, vector<128x32xf32>
    %c0_1 = arith.constant 0 : index
    %c0_2 = arith.constant 0 : index
    %1 = vector.load %arg2[%c0_1, %c0_2] : memref<1x32xf32, #tpu.memory_space<vmem>>, vector<1x32xf32>
    %c0_3 = arith.constant 0 : index
    %2 = memref.load %arg3[%c0_3] : memref<1xf32, #tpu.memory_space<smem>>
    %3 = vector.broadcast %1 : vector<1x32xf32> to vector<128x32xf32>
    %4 = arith.mulf %0, %3 : vector<128x32xf32>
    %cst = arith.constant dense<0.000000e+00> : vector<128xf32>
    %5 = vector.multi_reduction <add>, %4, %cst [1] : vector<128x32xf32> to vector<128xf32>
    %6 = vector.broadcast %2 : f32 to vector<128xf32>
    %7 = arith.addf %5, %6 : vector<128xf32>
    %cst_4 = arith.constant 0.000000e+00 : f32
    %8 = vector.broadcast %cst_4 : f32 to vector<128xf32>
    %9 = arith.cmpf olt, %7, %8 : vector<128xf32>
    %10 = arith.extui %9 : vector<128xi1> to vector<128xi32>
    %11 = vector.shape_cast %10 : vector<128xi32> to vector<1x128xi32>
    %c0_5 = arith.constant 0 : index
    %c0_6 = arith.constant 0 : index
    %12 = vector.load %arg4[%c0_5, %c0_6] : memref<1x128xi32, #tpu.memory_space<vmem>>, vector<1x128xi32>
    tpu.vector_store %arg4[%c0_5, %c0_6], %11 {strides = array<i32>} : memref<1x128xi32, #tpu.memory_space<vmem>>, vector<1x128xi32>,
    %13 = math.absf %7 : vector<128xf32>
    %cst_7 = arith.constant 0.000000e+00 : f32
    %14 = vector.broadcast %cst_7 : f32 to vector<128xf32>
    %15 = arith.subf %14, %13 : vector<128xf32>
    %16 = math.exp %15 : vector<128xf32>
    %17 = math.log1p %16 : vector<128xf32>
    %cst_8 = arith.constant 0.000000e+00 : f32
    %18 = vector.broadcast %cst_8 : f32 to vector<128xf32>
    %19 = arith.subf %18, %17 : vector<128xf32>
    %20 = vector.shape_cast %19 : vector<128xf32> to vector<1x128xf32>
    %c0_9 = arith.constant 0 : index
    %c0_10 = arith.constant 0 : index
    %21 = vector.load %arg5[%c0_9, %c0_10] : memref<1x128xf32, #tpu.memory_space<vmem>>, vector<1x128xf32>
    tpu.vector_store %arg5[%c0_9, %c0_10], %20 {strides = array<i32>} : memref<1x128xf32, #tpu.memory_space<vmem>>, vector<1x128xf32>,
    return
  }
  func.func @transform_0(%arg0: i32) -> (i32, i32) {
    %c0_i32 = arith.constant 0 : i32
    %c0_i32_0 = arith.constant 0 : i32
    return %arg0, %c0_i32 : i32, i32
  }
  func.func @transform_1(%arg0: i32) -> (i32, i32) {
    %c0_i32 = arith.constant 0 : i32
    %c0_i32_0 = arith.constant 0 : i32
    %c0_i32_1 = arith.constant 0 : i32
    return %c0_i32, %c0_i32_0 : i32, i32
  }
  func.func @transform_2(%arg0: i32) -> i32 {
    %c0_i32 = arith.constant 0 : i32
    %c0_i32_0 = arith.constant 0 : i32
    return %c0_i32 : i32
  }
  func.func @transform_3(%arg0: i32) -> (i32, i32) {
    %c0_i32 = arith.constant 0 : i32
    %c0_i32_0 = arith.constant 0 : i32
    return %c0_i32, %arg0 : i32, i32
  }
  func.func @transform_4(%arg0: i32) -> (i32, i32) {
    %c0_i32 = arith.constant 0 : i32
    %c0_i32_0 = arith.constant 0 : i32
    return %c0_i32, %arg0 : i32, i32
  }
}

</mosaic_0001>

<llo_original>
// kernel: tpu_custom_call.1
$region0: #{tpu_custom_call.1}
  #allocation0 [shape = 'u32[]', space=smem, size = 0x4, offset = 0x4, fixed_abs, tag = 'smem constant byte address 0x4 - core index']
  #allocation1 [shape = 'u32[144,128]{1,0:T(1,128)}', space=vmem, size = 0x12000, scoped, tag = 'internal scratch']
  #allocation2 [shape = 'f32[1]{0:T(128)S(6)}', space=smem, size = 0x200, scoped, tag = 'scoped memory for tpu_custom_call.1']
  %s0 = inlined_call_operand.vmem [shape: f32[300,32], index: 0, kind: input, shape index: {}]
  %s1 = inlined_call_operand.vmem [shape: f32[1,32], index: 1, kind: input, shape index: {}]
  %s2 = inlined_call_operand.<no memory space> [shape: f32[1], index: 2, kind: input, shape index: {}]
  %s3 = inlined_call_operand.hbm [shape: s32[1,300], index: 3, kind: output, shape index: {0}]
  %s4 = inlined_call_operand.hbm [shape: f32[1,300], index: 4, kind: output, shape index: {1}]
  %5 = xla_tuple %s3, %s4
  %s6 = sld [smem:[#allocation0]]
  $region53: #{tpu_custom_call.1} parent=0
    _
  %s8 = ssub.s32 1, %s6
  %s9 = scalar_select 0, %s8, %s6
  %10 = sst [smem:[#allocation2]] %s2
  $region1: #{tpu_custom_call.1} parent=0
    #allocation3 [shape = 'u8[1024]{0}', space=vmem, size = 0x400, scoped, tag = 'output window, operand 0']
    #allocation4 [shape = 's32[2]{0}', space=sflag, size = 0x8, scoped, tag = 'scoped memory for tpu_custom_call.1']
    #allocation5 [shape = 'u8[1024]{0}', space=vmem, size = 0x400, scoped, tag = 'output window, operand 1']
    #allocation6 [shape = 's32[2]{0}', space=sflag, size = 0x8, scoped, tag = 'scoped memory for tpu_custom_call.1']
    %11 = vsyncpa [#allocation4], 0
    %s12 = scalar_lea.sflag [#allocation4], 1
    %13 = vsyncpa %s12, 0
    %14 = vsyncpa [#allocation6], 0
    %s15 = scalar_lea.sflag [#allocation6], 1
    %16 = vsyncpa %s15, 0
    loop: start=0, step=1, limit=5
    $region2: #{tpu_custom_call.1} parent=1 // loop_pre_header
      _
    $region3: #{tpu_custom_call.1} parent=1 // loop_header
      %s18 = sphi 0, %s22
      %p19 = scmp.ge.s32.totalorder %s18, 5
      %s28 = sphi 0, %s30
      %s31 = sphi 0, %s28
      %s32 = sphi 0, %s31
      %s48 = sphi 0, %s32
      %s52 = sphi 0, %s52
      %s54 = sphi 0, %s52
      %s55 = sphi 0, %s54
      %s69 = sphi 0, %s55
      %s73 = sphi 0, %s73
      %s75 = sphi 0, %s73
      %s76 = sphi 0, %s75
      %s90 = sphi 0, %s76
      %s96 = sphi 0, %s98
      %s99 = sphi 0, %s96
      %s100 = sphi 0, %s99
      %s116 = sphi 0, %s100
      %s122 = sphi 0, %s124
      %s125 = sphi 0, %s122
      %s126 = sphi 0, %s125
      %s142 = sphi 0, %s126
    $region4: #{tpu_custom_call.1} parent=1 // loop_header_branch
      %21 = sbr.rel (%p19) target = $region8
    $region5: #{tpu_custom_call.1} parent=1 // loop_body
      %s23 = ssub.s32 %s18, 1
      %s24 = ssub.s32 %s18, 2
      %s25 = sadd.s32 %s18, 1
      %s26 = ssub.s32 %s18, %s25
      %p27 = scmp.eq.s32.totalorder %s26, 0
      %s29 = sadd.s32 %s28, 1
      %s30 = scalar_select %p27, %s28, %s29
      %p33 = pneg %p27
      %p34 = scmp.eq.s32.totalorder %s18, 2
      %p35 = por %p33, %p34
      %p36 = scmp.ne.s32.totalorder %s28, %s31
      %p37 = scmp.eq.s32.totalorder %s18, 0
      %p38 = por %p36, %p37
      %p39 = scmp.ne.s32.totalorder %s28, %s31
      %p40 = scmp.eq.s32.totalorder %s23, 2
      %p41 = por %p39, %p40
      %p42 = scmp.ne.s32.totalorder %s31, %s32
      %p43 = scmp.eq.s32.totalorder %s23, 0
      %p44 = por %p42, %p43
      %p45 = scmp.ne.s32.totalorder %s31, %s32
      %p46 = scmp.eq.s32.totalorder %s24, 2
      %p47 = por %p45, %p46
      %p49 = scmp.ne.s32.totalorder %s32, %s48
      %p50 = scmp.eq.s32.totalorder %s24, 0
      %p51 = por %p49, %p50
      %s53 = sadd.s32 %s52, 1
      %p56 = scmp.eq.s32.totalorder %s18, 2
      %p57 = scmp.ne.s32.totalorder %s52, %s54
      %p58 = scmp.eq.s32.totalorder %s18, 0
      %p59 = por %p57, %p58
      %p60 = scmp.ne.s32.totalorder %s52, %s54
      %p61 = scmp.eq.s32.totalorder %s23, 2
      %p62 = por %p60, %p61
      %p63 = scmp.ne.s32.totalorder %s54, %s55
      %p64 = scmp.eq.s32.totalorder %s23, 0
      %p65 = por %p63, %p64
      %p66 = scmp.ne.s32.totalorder %s54, %s55
      %p67 = scmp.eq.s32.totalorder %s24, 2
      %p68 = por %p66, %p67
      %p70 = scmp.ne.s32.totalorder %s55, %s69
      %p71 = scmp.eq.s32.totalorder %s24, 0
      %p72 = por %p70, %p71
      %s74 = sadd.s32 %s73, 1
      %p77 = scmp.eq.s32.totalorder %s18, 2
      %p78 = scmp.ne.s32.totalorder %s73, %s75
      %p79 = scmp.eq.s32.totalorder %s18, 0
      %p80 = por %p78, %p79
      %p81 = scmp.ne.s32.totalorder %s73, %s75
      %p82 = scmp.eq.s32.totalorder %s23, 2
      %p83 = por %p81, %p82
      %p84 = scmp.ne.s32.totalorder %s75, %s76
      %p85 = scmp.eq.s32.totalorder %s23, 0
      %p86 = por %p84, %p85
      %p87 = scmp.ne.s32.totalorder %s75, %s76
      %p88 = scmp.eq.s32.totalorder %s24, 2
      %p89 = por %p87, %p88
      %p91 = scmp.ne.s32.totalorder %s76, %s90
      %p92 = scmp.eq.s32.totalorder %s24, 0
      %p93 = por %p91, %p92
      %s94 = ssub.s32 %s18, %s25
      %p95 = scmp.eq.s32.totalorder %s94, 0
      %s97 = sadd.s32 %s96, 1
      %s98 = scalar_select %p95, %s96, %s97
      %p101 = pneg %p95
      %p102 = scmp.eq.s32.totalorder %s18, 2
      %p103 = por %p101, %p102
      %p104 = scmp.ne.s32.totalorder %s96, %s99
      %p105 = scmp.eq.s32.totalorder %s18, 0
      %p106 = por %p104, %p105
      %p107 = scmp.ne.s32.totalorder %s96, %s99
      %p108 = scmp.eq.s32.totalorder %s23, 2
      %p109 = por %p107, %p108
      %p110 = scmp.ne.s32.totalorder %s99, %s100
      %p111 = scmp.eq.s32.totalorder %s23, 0
      %p112 = por %p110, %p111
      %p113 = scmp.ne.s32.totalorder %s99, %s100
      %p114 = scmp.eq.s32.totalorder %s24, 2
      %p115 = por %p113, %p114
      %p117 = scmp.ne.s32.totalorder %s100, %s116
      %p118 = scmp.eq.s32.totalorder %s24, 0
      %p119 = por %p117, %p118
      %s120 = ssub.s32 %s18, %s25
      %p121 = scmp.eq.s32.totalorder %s120, 0
      %s123 = sadd.s32 %s122, 1
      %s124 = scalar_select %p121, %s122, %s123
      %p127 = pneg %p121
      %p128 = scmp.eq.s32.totalorder %s18, 2
      %p129 = por %p127, %p128
      %p130 = scmp.ne.s32.totalorder %s122, %s125
      %p131 = scmp.eq.s32.totalorder %s18, 0
      %p132 = por %p130, %p131
      %p133 = scmp.ne.s32.totalorder %s122, %s125
      %p134 = scmp.eq.s32.totalorder %s23, 2
      %p135 = por %p133, %p134
      %p136 = scmp.ne.s32.totalorder %s125, %s126
      %p137 = scmp.eq.s32.totalorder %s23, 0
      %p138 = por %p136, %p137
      %p139 = scmp.ne.s32.totalorder %s125, %s126
      %p140 = scmp.eq.s32.totalorder %s24, 2
      %p141 = por %p139, %p140
      %p143 = scmp.ne.s32.totalorder %s126, %s142
      %p144 = scmp.eq.s32.totalorder %s24, 0
      %p145 = por %p143, %p144
      %p146 = scmp.le.s32.totalorder 1, %s18
      %p147 = scmp.lt.s32.totalorder %s18, 4
      %p148 = pnand %p146, %p147
      %p149 = pneg %p148
      // Predicated region
      $region9: #{tpu_custom_call.1} parent=5 // pred_check
        _
      $region10: #{tpu_custom_call.1} parent=5 // pred_check_branch
        %151 = sbr.rel (%p148) target = $region12
      $region11: #{tpu_custom_call.1} parent=5 // pred_region
        %s152 = ssub.s32 %s18, 1
        // Predicated region
        $region13: #{tpu_custom_call.1} parent=11 // pred_check
          %p153 = pneg %p65
        $region14: #{tpu_custom_call.1} parent=11 // pred_check_branch
          %155 = sbr.rel (%p153) target = $region16
        $region15: #{tpu_custom_call.1} parent=11 // pred_region
          _
        $region16: #{tpu_custom_call.1} parent=11 // pred_fallthru
          _
        // Predicated region
        $region17: #{tpu_custom_call.1} parent=11 // pred_check
          %p156 = pneg %p86
        $region18: #{tpu_custom_call.1} parent=11 // pred_check_branch
          %158 = sbr.rel (%p156) target = $region20
        $region19: #{tpu_custom_call.1} parent=11 // pred_region
          _
        $region20: #{tpu_custom_call.1} parent=11 // pred_fallthru
          _
      $region12: #{tpu_custom_call.1} parent=5 // pred_fallthru
        _
      %p159 = scmp.lt.s32.totalorder %s18, 3
      // Predicated region
      $region21: #{tpu_custom_call.1} parent=5 // pred_check
        %p160 = pneg %p159
      $region22: #{tpu_custom_call.1} parent=5 // pred_check_branch
        %162 = sbr.rel (%p160) target = $region24
      $region23: #{tpu_custom_call.1} parent=5 // pred_region
        // Predicated region
        $region25: #{tpu_custom_call.1} parent=23 // pred_check
          %p163 = pneg %p38
        $region26: #{tpu_custom_call.1} parent=23 // pred_check_branch
          %165 = sbr.rel (%p163) target = $region28
        $region27: #{tpu_custom_call.1} parent=23 // pred_region
          %s166 = smul.u32 16, %s18
          %s167 = ssub.s32 38, %s166
          %p168 = scmp.lt.s32.totalorder %s167, 16
          %s169 = scalar_select %p168, %s167, 16
          %s170 = smul.u32 128, %s169
          %p171 = scmp.lt.s32.totalorder %s166, 37
          %s172 = scalar_select %p171, %s166, 37
          %s173 = smul.addr %s172, 8
          %s174 = scalar_lea.vmem %s0, %s173
          %s175 = smul.u32 16, %s18
          %s176 = ssub.s32 38, %s175
          %p177 = scmp.lt.s32.totalorder %s176, 16
          %s178 = scalar_select %p177, %s176, 16
          %s179 = smul.u32 128, %s178
        $region28: #{tpu_custom_call.1} parent=23 // pred_fallthru
          _
      $region24: #{tpu_custom_call.1} parent=5 // pred_fallthru
        _
      %p180 = scmp.le.s32.totalorder 1, %s18
      %p181 = scmp.lt.s32.totalorder %s18, 4
      %p182 = pnand %p180, %p181
      %p183 = pneg %p182
      // Predicated region
      $region29: #{tpu_custom_call.1} parent=5 // pred_check
        _
      $region30: #{tpu_custom_call.1} parent=5 // pred_check_branch
        %185 = sbr.rel (%p182) target = $region32
      $region31: #{tpu_custom_call.1} parent=5 // pred_region
        %s186 = ssub.s32 %s18, 1
        %s187 = smul.u32 16, %s23
        %s188 = ssub.s32 38, %s187
        %p189 = scmp.lt.s32.totalorder %s188, 16
        %s190 = scalar_select %p189, %s188, 16
        %s191 = smul.u32 128, %s190
        %p192 = scmp.lt.s32.totalorder %s187, 37
        %s193 = scalar_select %p192, %s187, 37
        %s194 = smul.addr %s193, 8
        %s195 = scalar_lea.vmem %s0, %s194
        %p196 = pneg %p44
        %p197 = pneg %p41
        %p198 = pneg %p65
        %p199 = pneg %p62
        %p200 = pneg %p86
        %p201 = pneg %p83
        %p202 = pneg %p112
        %p203 = pneg %p109
        %s204 = sand.u32 %s99, 1
        %s205 = scalar_lea.sflag [#allocation4], %s204
        %s206 = sand.u32 %s99, 1
        %s207 = scalar_lea.vmem [#allocation3], %s206
        %p208 = pneg %p138
        %p209 = pneg %p135
        %s210 = sand.u32 %s125, 1
        %s211 = scalar_lea.sflag [#allocation6], %s210
        %s212 = sand.u32 %s125, 1
        %s213 = scalar_lea.vmem [#allocation5], %s212
        %s214 = smul.u32 16, %s23
        %s215 = ssub.s32 38, %s214
        %p216 = scmp.lt.s32.totalorder %s215, 16
        %s217 = scalar_select %p216, %s215, 16
        %s218 = smul.u32 128, %s217
        %p219 = scmp.lt.s32.totalorder %s214, 37
        %s220 = scalar_select %p219, %s214, 37
        %s221 = smul.addr %s220, 8
        %s222 = scalar_lea.vmem %s0, %s221
        %s223 = smul.u32 16, %s23
        %s224 = ssub.s32 38, %s223
        %p225 = scmp.lt.s32.totalorder %s224, 16
        %s226 = scalar_select %p225, %s224, 16
        %s227 = smul.u32 128, %s226
        %v228 = vld [vmem:[%s222] sm:$0xff]
        %v229 = vld [vmem:[%s222 + $0x8] sm:$0xff]
        %v230 = vld [vmem:[%s222 + $0x10] sm:$0xff]
        %v231 = vld [vmem:[%s222 + $0x18] sm:$0xff]
        %v232 = vld [vmem:[%s222 + $0x20] sm:$0xff]
        %v233 = vld [vmem:[%s222 + $0x28] sm:$0xff]
        %v234 = vld [vmem:[%s222 + $0x30] sm:$0xff]
        %v235 = vld [vmem:[%s222 + $0x38] sm:$0xff]
        %v236 = vld [vmem:[%s222 + $0x40] sm:$0xff]
        %v237 = vld [vmem:[%s222 + $0x48] sm:$0xff]
        %v238 = vld [vmem:[%s222 + $0x50] sm:$0xff]
        %v239 = vld [vmem:[%s222 + $0x58] sm:$0xff]
        %v240 = vld [vmem:[%s222 + $0x60] sm:$0xff]
        %v241 = vld [vmem:[%s222 + $0x68] sm:$0xff]
        %v242 = vld [vmem:[%s222 + $0x70] sm:$0xff]
        %v243 = vld [vmem:[%s222 + $0x78] sm:$0xff]
        %v244 = vld [vmem:[%s1] sm:$0x1]
        %s245 = sld [smem:[#allocation2]]
        %v247 = vlaneseq
        %v248 = vshrl.u32 %v247, 7
        %v249 = vsub.s32 0, %v248
        %v250 = vrot.slane %v244, %v249
        %v252 = vmul.f32 %v228, %v250
        %v253 = vmul.f32 %v229, %v250
        %v254 = vmul.f32 %v230, %v250
        %v255 = vmul.f32 %v231, %v250
        %v256 = vmul.f32 %v232, %v250
        %v257 = vmul.f32 %v233, %v250
        %v258 = vmul.f32 %v234, %v250
        %v259 = vmul.f32 %v235, %v250
        %v260 = vmul.f32 %v236, %v250
        %v261 = vmul.f32 %v237, %v250
        %v262 = vmul.f32 %v238, %v250
        %v263 = vmul.f32 %v239, %v250
        %v264 = vmul.f32 %v240, %v250
        %v265 = vmul.f32 %v241, %v250
        %v266 = vmul.f32 %v242, %v250
        %v267 = vmul.f32 %v243, %v250
        %vm268 = vcmask 261120
        %v269 = vsel %vm268, %v252, 0.0
        %270 = vadd.xlane.f32.xlu0 %v269
        %v271 = vpop.xlane.xlu0 %270
        %v272 = vsel %vm268, %v253, 0.0
        %273 = vadd.xlane.f32.xlu0 %v272
        %v274 = vpop.xlane.xlu0 %273
        %v275 = vsel %vm268, %v254, 0.0
        %276 = vadd.xlane.f32.xlu0 %v275
        %v277 = vpop.xlane.xlu0 %276
        %v278 = vsel %vm268, %v255, 0.0
        %279 = vadd.xlane.f32.xlu0 %v278
        %v280 = vpop.xlane.xlu0 %279
        %v281 = vsel %vm268, %v256, 0.0
        %282 = vadd.xlane.f32.xlu0 %v281
        %v283 = vpop.xlane.xlu0 %282
        %v284 = vsel %vm268, %v257, 0.0
        %285 = vadd.xlane.f32.xlu0 %v284
        %v286 = vpop.xlane.xlu0 %285
        %v287 = vsel %vm268, %v258, 0.0
        %288 = vadd.xlane.f32.xlu0 %v287
        %v289 = vpop.xlane.xlu0 %288
        %v290 = vsel %vm268, %v259, 0.0
        %291 = vadd.xlane.f32.xlu0 %v290
        %v292 = vpop.xlane.xlu0 %291
        %v293 = vsel %vm268, %v260, 0.0
        %294 = vadd.xlane.f32.xlu0 %v293
        %v295 = vpop.xlane.xlu0 %294
        %v296 = vsel %vm268, %v261, 0.0
        %297 = vadd.xlane.f32.xlu0 %v296
        %v298 = vpop.xlane.xlu0 %297
        %v299 = vsel %vm268, %v262, 0.0
        %300 = vadd.xlane.f32.xlu0 %v299
        %v301 = vpop.xlane.xlu0 %300
        %v302 = vsel %vm268, %v263, 0.0
        %303 = vadd.xlane.f32.xlu0 %v302
        %v304 = vpop.xlane.xlu0 %303
        %v305 = vsel %vm268, %v264, 0.0
        %306 = vadd.xlane.f32.xlu0 %v305
        %v307 = vpop.xlane.xlu0 %306
        %v308 = vsel %vm268, %v265, 0.0
        %309 = vadd.xlane.f32.xlu0 %v308
        %v310 = vpop.xlane.xlu0 %309
        %v311 = vsel %vm268, %v266, 0.0
        %312 = vadd.xlane.f32.xlu0 %v311
        %v313 = vpop.xlane.xlu0 %312
        %v314 = vsel %vm268, %v267, 0.0
        %315 = vadd.xlane.f32.xlu0 %v314
        %v316 = vpop.xlane.xlu0 %315
        %v317 = vstv %s245
        %v318 = vadd.f32 %v271, %v317
        %v319 = vadd.f32 %v274, %v317
        %v320 = vadd.f32 %v277, %v317
        %v321 = vadd.f32 %v280, %v317
        %v322 = vadd.f32 %v283, %v317
        %v323 = vadd.f32 %v286, %v317
        %v324 = vadd.f32 %v289, %v317
        %v325 = vadd.f32 %v292, %v317
        %v326 = vadd.f32 %v295, %v317
        %v327 = vadd.f32 %v298, %v317
        %v328 = vadd.f32 %v301, %v317
        %v329 = vadd.f32 %v304, %v317
        %v330 = vadd.f32 %v307, %v317
        %v331 = vadd.f32 %v310, %v317
        %v332 = vadd.f32 %v313, %v317
        %v333 = vadd.f32 %v316, %v317
        %vm334 = vcmp.lt.f32.partialorder %v318, 0.0
        %vm335 = vcmp.lt.f32.partialorder %v319, 0.0
        %vm336 = vcmp.lt.f32.partialorder %v320, 0.0
        %vm337 = vcmp.lt.f32.partialorder %v321, 0.0
        %vm338 = vcmp.lt.f32.partialorder %v322, 0.0
        %vm339 = vcmp.lt.f32.partialorder %v323, 0.0
        %vm340 = vcmp.lt.f32.partialorder %v324, 0.0
        %vm341 = vcmp.lt.f32.partialorder %v325, 0.0
        %vm342 = vcmp.lt.f32.partialorder %v326, 0.0
        %vm343 = vcmp.lt.f32.partialorder %v327, 0.0
        %vm344 = vcmp.lt.f32.partialorder %v328, 0.0
        %vm345 = vcmp.lt.f32.partialorder %v329, 0.0
        %vm346 = vcmp.lt.f32.partialorder %v330, 0.0
        %vm347 = vcmp.lt.f32.partialorder %v331, 0.0
        %vm348 = vcmp.lt.f32.partialorder %v332, 0.0
        %vm349 = vcmp.lt.f32.partialorder %v333, 0.0
        %v350 = vsel %vm334, 1, 0
        %v351 = vsel %vm335, 1, 0
        %v352 = vsel %vm336, 1, 0
        %v353 = vsel %vm337, 1, 0
        %v354 = vsel %vm338, 1, 0
        %v355 = vsel %vm339, 1, 0
        %v356 = vsel %vm340, 1, 0
        %v357 = vsel %vm341, 1, 0
        %v358 = vsel %vm342, 1, 0
        %v359 = vsel %vm343, 1, 0
        %v360 = vsel %vm344, 1, 0
        %v361 = vsel %vm345, 1, 0
        %v362 = vsel %vm346, 1, 0
        %v363 = vsel %vm347, 1, 0
        %v364 = vsel %vm348, 1, 0
        %v365 = vsel %vm349, 1, 0
        %v366 = vlaneseq
        %v367 = vand.u32 %v366, 127
        %v368 = vlaneseq
        %v369 = vshrl.u32 %v368, 7
        %v370 = vsub.s32 %v367, %v369
        %v371 = vrot.slane %v350, %v370
        %v372 = vadd.s32 %v367, 4294967288
        %v373 = vlaneseq
        %v374 = vshrl.u32 %v373, 7
        %v375 = vsub.s32 %v372, %v374
        %v376 = vrot.slane %v351, %v375
        %vm377 = vcmask 130112
        %v378 = vsel %vm377, %v376, %v371
        %v379 = vadd.s32 %v367, 4294967280
        %v380 = vlaneseq
        %v381 = vshrl.u32 %v380, 7
        %v382 = vsub.s32 %v379, %v381
        %v383 = vrot.slane %v352, %v382
        %vm384 = vcmask 195712
        %v385 = vsel %vm384, %v383, %v378
        %v386 = vadd.s32 %v367, 4294967272
        %v387 = vlaneseq
        %v388 = vshrl.u32 %v387, 7
        %v389 = vsub.s32 %v386, %v388
        %v390 = vrot.slane %v353, %v389
        %vm391 = vcmask 261312
        %v392 = vsel %vm391, %v390, %v385
        %v393 = vadd.s32 %v367, 4294967264
        %v394 = vlaneseq
        %v395 = vshrl.u32 %v394, 7
        %v396 = vsub.s32 %v393, %v395
        %v397 = vrot.slane %v354, %v396
        %vm398 = vcmask 326912
        %v399 = vsel %vm398, %v397, %v392
        %v400 = vadd.s32 %v367, 4294967256
        %v401 = vlaneseq
        %v402 = vshrl.u32 %v401, 7
        %v403 = vsub.s32 %v400, %v402
        %v404 = vrot.slane %v355, %v403
        %vm405 = vcmask 392512
        %v406 = vsel %vm405, %v404, %v399
        %v407 = vadd.s32 %v367, 4294967248
        %v408 = vlaneseq
        %v409 = vshrl.u32 %v408, 7
        %v410 = vsub.s32 %v407, %v409
        %v411 = vrot.slane %v356, %v410
        %vm412 = vcmask 458112
        %v413 = vsel %vm412, %v411, %v406
        %v414 = vadd.s32 %v367, 4294967240
        %v415 = vlaneseq
        %v416 = vshrl.u32 %v415, 7
        %v417 = vsub.s32 %v414, %v416
        %v418 = vrot.slane %v357, %v417
        %vm419 = vcmask 523712
        %v420 = vsel %vm419, %v418, %v413
        %v421 = vadd.s32 %v367, 4294967232
        %v422 = vlaneseq
        %v423 = vshrl.u32 %v422, 7
        %v424 = vsub.s32 %v421, %v423
        %v425 = vrot.slane %v358, %v424
        %vm426 = vcmask 589312
        %v427 = vsel %vm426, %v425, %v420
        %v428 = vadd.s32 %v367, 4294967224
        %v429 = vlaneseq
        %v430 = vshrl.u32 %v429, 7
        %v431 = vsub.s32 %v428, %v430
        %v432 = vrot.slane %v359, %v431
        %vm433 = vcmask 654912
        %v434 = vsel %vm433, %v432, %v427
        %v435 = vadd.s32 %v367, 4294967216
        %v436 = vlaneseq
        %v437 = vshrl.u32 %v436, 7
        %v438 = vsub.s32 %v435, %v437
        %v439 = vrot.slane %v360, %v438
        %vm440 = vcmask 720512
        %v441 = vsel %vm440, %v439, %v434
        %v442 = vadd.s32 %v367, 4294967208
        %v443 = vlaneseq
        %v444 = vshrl.u32 %v443, 7
        %v445 = vsub.s32 %v442, %v444
        %v446 = vrot.slane %v361, %v445
        %vm447 = vcmask 786112
        %v448 = vsel %vm447, %v446, %v441
        %v449 = vadd.s32 %v367, 4294967200
        %v450 = vlaneseq
        %v451 = vshrl.u32 %v450, 7
        %v452 = vsub.s32 %v449, %v451
        %v453 = vrot.slane %v362, %v452
        %vm454 = vcmask 851712
        %v455 = vsel %vm454, %v453, %v448
        %v456 = vadd.s32 %v367, 4294967192
        %v457 = vlaneseq
        %v458 = vshrl.u32 %v457, 7
        %v459 = vsub.s32 %v456, %v458
        %v460 = vrot.slane %v363, %v459
        %vm461 = vcmask 917312
        %v462 = vsel %vm461, %v460, %v455
        %v463 = vadd.s32 %v367, 4294967184
        %v464 = vlaneseq
        %v465 = vshrl.u32 %v464, 7
        %v466 = vsub.s32 %v463, %v465
        %v467 = vrot.slane %v364, %v466
        %vm468 = vcmask 982912
        %v469 = vsel %vm468, %v467, %v462
        %v470 = vadd.s32 %v367, 4294967176
        %v471 = vlaneseq
        %v472 = vshrl.u32 %v471, 7
        %v473 = vsub.s32 %v470, %v472
        %v474 = vrot.slane %v365, %v473
        %vm475 = vcmask 1048512
        %v476 = vsel %vm475, %v474, %v469
        %477 = vst [vmem:[%s207] sm:$0x1] %v476
        %v478 = vand.u32 2147483647, %v318
        %v479 = vand.u32 2147483647, %v319
        %v480 = vand.u32 2147483647, %v320
        %v481 = vand.u32 2147483647, %v321
        %v482 = vand.u32 2147483647, %v322
        %v483 = vand.u32 2147483647, %v323
        %v484 = vand.u32 2147483647, %v324
        %v485 = vand.u32 2147483647, %v325
        %v486 = vand.u32 2147483647, %v326
        %v487 = vand.u32 2147483647, %v327
        %v488 = vand.u32 2147483647, %v328
        %v489 = vand.u32 2147483647, %v329
        %v490 = vand.u32 2147483647, %v330
        %v491 = vand.u32 2147483647, %v331
        %v492 = vand.u32 2147483647, %v332
        %v493 = vand.u32 2147483647, %v333
        %v494 = vsub.f32 0.0, %v478
        %v495 = vsub.f32 0.0, %v479
        %v496 = vsub.f32 0.0, %v480
        %v497 = vsub.f32 0.0, %v481
        %v498 = vsub.f32 0.0, %v482
        %v499 = vsub.f32 0.0, %v483
        %v500 = vsub.f32 0.0, %v484
        %v501 = vsub.f32 0.0, %v485
        %v502 = vsub.f32 0.0, %v486
        %v503 = vsub.f32 0.0, %v487
        %v504 = vsub.f32 0.0, %v488
        %v505 = vsub.f32 0.0, %v489
        %v506 = vsub.f32 0.0, %v490
        %v507 = vsub.f32 0.0, %v491
        %v508 = vsub.f32 0.0, %v492
        %v509 = vsub.f32 0.0, %v493
        %v510 = vmul.f32 %v494, 1.442695
        %v511 = vpow.pop %v510
        %v512 = vmul.f32 %v495, 1.442695
        %v513 = vpow.pop %v512
        %v514 = vmul.f32 %v496, 1.442695
        %v515 = vpow.pop %v514
        %v516 = vmul.f32 %v497, 1.442695
        %v517 = vpow.pop %v516
        %v518 = vmul.f32 %v498, 1.442695
        %v519 = vpow.pop %v518
        %v520 = vmul.f32 %v499, 1.442695
        %v521 = vpow.pop %v520
        %v522 = vmul.f32 %v500, 1.442695
        %v523 = vpow.pop %v522
        %v524 = vmul.f32 %v501, 1.442695
        %v525 = vpow.pop %v524
        %v526 = vmul.f32 %v502, 1.442695
        %v527 = vpow.pop %v526
        %v528 = vmul.f32 %v503, 1.442695
        %v529 = vpow.pop %v528
        %v530 = vmul.f32 %v504, 1.442695
        %v531 = vpow.pop %v530
        %v532 = vmul.f32 %v505, 1.442695
        %v533 = vpow.pop %v532
        %v534 = vmul.f32 %v506, 1.442695
        %v535 = vpow.pop %v534
        %v536 = vmul.f32 %v507, 1.442695
        %v537 = vpow.pop %v536
        %v538 = vmul.f32 %v508, 1.442695
        %v539 = vpow.pop %v538
        %v540 = vmul.f32 %v509, 1.442695
        %v541 = vpow.pop %v540
        %v542 = vadd.f32 %v511, 1.0
        %v543 = vlog2.pop %v542
        %v544 = vmul.f32 %v543, 0.6931472
        %v545 = vmul.f32 -0.5, %v511
        %v546 = vadd.f32 %v545, 1.0
        %v547 = vmul.f32 %v546, %v511
        %v548 = vand.u32 2147483647, %v511
        %vm549 = vcmp.lt.f32.partialorder %v548, 0.0004427343
        %v550 = vsel %vm549, %v547, %v544
        %v551 = vadd.f32 %v513, 1.0
        %v552 = vlog2.pop %v551
        %v553 = vmul.f32 %v552, 0.6931472
        %v554 = vmul.f32 -0.5, %v513
        %v555 = vadd.f32 %v554, 1.0
        %v556 = vmul.f32 %v555, %v513
        %v557 = vand.u32 2147483647, %v513
        %vm558 = vcmp.lt.f32.partialorder %v557, 0.0004427343
        %v559 = vsel %vm558, %v556, %v553
        %v560 = vadd.f32 %v515, 1.0
        %v561 = vlog2.pop %v560
        %v562 = vmul.f32 %v561, 0.6931472
        %v563 = vmul.f32 -0.5, %v515
        %v564 = vadd.f32 %v563, 1.0
        %v565 = vmul.f32 %v564, %v515
        %v566 = vand.u32 2147483647, %v515
        %vm567 = vcmp.lt.f32.partialorder %v566, 0.0004427343
        %v568 = vsel %vm567, %v565, %v562
        %v569 = vadd.f32 %v517, 1.0
        %v570 = vlog2.pop %v569
        %v571 = vmul.f32 %v570, 0.6931472
        %v572 = vmul.f32 -0.5, %v517
        %v573 = vadd.f32 %v572, 1.0
        %v574 = vmul.f32 %v573, %v517
        %v575 = vand.u32 2147483647, %v517
        %vm576 = vcmp.lt.f32.partialorder %v575, 0.0004427343
        %v577 = vsel %vm576, %v574, %v571
        %v578 = vadd.f32 %v519, 1.0
        %v579 = vlog2.pop %v578
        %v580 = vmul.f32 %v579, 0.6931472
        %v581 = vmul.f32 -0.5, %v519
        %v582 = vadd.f32 %v581, 1.0
        %v583 = vmul.f32 %v582, %v519
        %v584 = vand.u32 2147483647, %v519
        %vm585 = vcmp.lt.f32.partialorder %v584, 0.0004427343
        %v586 = vsel %vm585, %v583, %v580
        %v587 = vadd.f32 %v521, 1.0
        %v588 = vlog2.pop %v587
        %v589 = vmul.f32 %v588, 0.6931472
        %v590 = vmul.f32 -0.5, %v521
        %v591 = vadd.f32 %v590, 1.0
        %v592 = vmul.f32 %v591, %v521
        %v593 = vand.u32 2147483647, %v521
        %vm594 = vcmp.lt.f32.partialorder %v593, 0.0004427343
        %v595 = vsel %vm594, %v592, %v589
        %v596 = vadd.f32 %v523, 1.0
        %v597 = vlog2.pop %v596
        %v598 = vmul.f32 %v597, 0.6931472
        %v599 = vmul.f32 -0.5, %v523
        %v600 = vadd.f32 %v599, 1.0
        %v601 = vmul.f32 %v600, %v523
        %v602 = vand.u32 2147483647, %v523
        %vm603 = vcmp.lt.f32.partialorder %v602, 0.0004427343
        %v604 = vsel %vm603, %v601, %v598
        %v605 = vadd.f32 %v525, 1.0
        %v606 = vlog2.pop %v605
        %v607 = vmul.f32 %v606, 0.6931472
        %v608 = vmul.f32 -0.5, %v525
        %v609 = vadd.f32 %v608, 1.0
        %v610 = vmul.f32 %v609, %v525
        %v611 = vand.u32 2147483647, %v525
        %vm612 = vcmp.lt.f32.partialorder %v611, 0.0004427343
        %v613 = vsel %vm612, %v610, %v607
        %v614 = vadd.f32 %v527, 1.0
        %v615 = vlog2.pop %v614
        %v616 = vmul.f32 %v615, 0.6931472
        %v617 = vmul.f32 -0.5, %v527
        %v618 = vadd.f32 %v617, 1.0
        %v619 = vmul.f32 %v618, %v527
        %v620 = vand.u32 2147483647, %v527
        %vm621 = vcmp.lt.f32.partialorder %v620, 0.0004427343
        %v622 = vsel %vm621, %v619, %v616
        %v623 = vadd.f32 %v529, 1.0
        %v624 = vlog2.pop %v623
        %v625 = vmul.f32 %v624, 0.6931472
        %v626 = vmul.f32 -0.5, %v529
        %v627 = vadd.f32 %v626, 1.0
        %v628 = vmul.f32 %v627, %v529
        %v629 = vand.u32 2147483647, %v529
        %vm630 = vcmp.lt.f32.partialorder %v629, 0.0004427343
        %v631 = vsel %vm630, %v628, %v625
        %v632 = vadd.f32 %v531, 1.0
        %v633 = vlog2.pop %v632
        %v634 = vmul.f32 %v633, 0.6931472
        %v635 = vmul.f32 -0.5, %v531
        %v636 = vadd.f32 %v635, 1.0
        %v637 = vmul.f32 %v636, %v531
        %v638 = vand.u32 2147483647, %v531
        %vm639 = vcmp.lt.f32.partialorder %v638, 0.0004427343
        %v640 = vsel %vm639, %v637, %v634
        %v641 = vadd.f32 %v533, 1.0
        %v642 = vlog2.pop %v641
        %v643 = vmul.f32 %v642, 0.6931472
        %v644 = vmul.f32 -0.5, %v533
        %v645 = vadd.f32 %v644, 1.0
        %v646 = vmul.f32 %v645, %v533
        %v647 = vand.u32 2147483647, %v533
        %vm648 = vcmp.lt.f32.partialorder %v647, 0.0004427343
        %v649 = vsel %vm648, %v646, %v643
        %v650 = vadd.f32 %v535, 1.0
        %v651 = vlog2.pop %v650
        %v652 = vmul.f32 %v651, 0.6931472
        %v653 = vmul.f32 -0.5, %v535
        %v654 = vadd.f32 %v653, 1.0
        %v655 = vmul.f32 %v654, %v535
        %v656 = vand.u32 2147483647, %v535
        %vm657 = vcmp.lt.f32.partialorder %v656, 0.0004427343
        %v658 = vsel %vm657, %v655, %v652
        %v659 = vadd.f32 %v537, 1.0
        %v660 = vlog2.pop %v659
        %v661 = vmul.f32 %v660, 0.6931472
        %v662 = vmul.f32 -0.5, %v537
        %v663 = vadd.f32 %v662, 1.0
        %v664 = vmul.f32 %v663, %v537
        %v665 = vand.u32 2147483647, %v537
        %vm666 = vcmp.lt.f32.partialorder %v665, 0.0004427343
        %v667 = vsel %vm666, %v664, %v661
        %v668 = vadd.f32 %v539, 1.0
        %v669 = vlog2.pop %v668
        %v670 = vmul.f32 %v669, 0.6931472
        %v671 = vmul.f32 -0.5, %v539
        %v672 = vadd.f32 %v671, 1.0
        %v673 = vmul.f32 %v672, %v539
        %v674 = vand.u32 2147483647, %v539
        %vm675 = vcmp.lt.f32.partialorder %v674, 0.0004427343
        %v676 = vsel %vm675, %v673, %v670
        %v677 = vadd.f32 %v541, 1.0
        %v678 = vlog2.pop %v677
        %v679 = vmul.f32 %v678, 0.6931472
        %v680 = vmul.f32 -0.5, %v541
        %v681 = vadd.f32 %v680, 1.0
        %v682 = vmul.f32 %v681, %v541
        %v683 = vand.u32 2147483647, %v541
        %vm684 = vcmp.lt.f32.partialorder %v683, 0.0004427343
        %v685 = vsel %vm684, %v682, %v679
        %v686 = vsub.f32 0.0, %v550
        %v687 = vsub.f32 0.0, %v559
        %v688 = vsub.f32 0.0, %v568
        %v689 = vsub.f32 0.0, %v577
        %v690 = vsub.f32 0.0, %v586
        %v691 = vsub.f32 0.0, %v595
        %v692 = vsub.f32 0.0, %v604
        %v693 = vsub.f32 0.0, %v613
        %v694 = vsub.f32 0.0, %v622
        %v695 = vsub.f32 0.0, %v631
        %v696 = vsub.f32 0.0, %v640
        %v697 = vsub.f32 0.0, %v649
        %v698 = vsub.f32 0.0, %v658
        %v699 = vsub.f32 0.0, %v667
        %v700 = vsub.f32 0.0, %v676
        %v701 = vsub.f32 0.0, %v685
        %v718 = vlaneseq
        %v719 = vshrl.u32 %v718, 7
        %v720 = vsub.s32 %v367, %v719
        %v721 = vrot.slane %v686, %v720
        %v722 = vlaneseq
        %v723 = vshrl.u32 %v722, 7
        %v724 = vsub.s32 %v372, %v723
        %v725 = vrot.slane %v687, %v724
        %v726 = vsel %vm377, %v725, %v721
        %v727 = vlaneseq
        %v728 = vshrl.u32 %v727, 7
        %v729 = vsub.s32 %v379, %v728
        %v730 = vrot.slane %v688, %v729
        %v731 = vsel %vm384, %v730, %v726
        %v732 = vlaneseq
        %v733 = vshrl.u32 %v732, 7
        %v734 = vsub.s32 %v386, %v733
        %v735 = vrot.slane %v689, %v734
        %v736 = vsel %vm391, %v735, %v731
        %v737 = vlaneseq
        %v738 = vshrl.u32 %v737, 7
        %v739 = vsub.s32 %v393, %v738
        %v740 = vrot.slane %v690, %v739
        %v741 = vsel %vm398, %v740, %v736
        %v742 = vlaneseq
        %v743 = vshrl.u32 %v742, 7
        %v744 = vsub.s32 %v400, %v743
        %v745 = vrot.slane %v691, %v744
        %v746 = vsel %vm405, %v745, %v741
        %v747 = vlaneseq
        %v748 = vshrl.u32 %v747, 7
        %v749 = vsub.s32 %v407, %v748
        %v750 = vrot.slane %v692, %v749
        %v751 = vsel %vm412, %v750, %v746
        %v752 = vlaneseq
        %v753 = vshrl.u32 %v752, 7
        %v754 = vsub.s32 %v414, %v753
        %v755 = vrot.slane %v693, %v754
        %v756 = vsel %vm419, %v755, %v751
        %v757 = vlaneseq
        %v758 = vshrl.u32 %v757, 7
        %v759 = vsub.s32 %v421, %v758
        %v760 = vrot.slane %v694, %v759
        %v761 = vsel %vm426, %v760, %v756
        %v762 = vlaneseq
        %v763 = vshrl.u32 %v762, 7
        %v764 = vsub.s32 %v428, %v763
        %v765 = vrot.slane %v695, %v764
        %v766 = vsel %vm433, %v765, %v761
        %v767 = vlaneseq
        %v768 = vshrl.u32 %v767, 7
        %v769 = vsub.s32 %v435, %v768
        %v770 = vrot.slane %v696, %v769
        %v771 = vsel %vm440, %v770, %v766
        %v772 = vlaneseq
        %v773 = vshrl.u32 %v772, 7
        %v774 = vsub.s32 %v442, %v773
        %v775 = vrot.slane %v697, %v774
        %v776 = vsel %vm447, %v775, %v771
        %v777 = vlaneseq
        %v778 = vshrl.u32 %v777, 7
        %v779 = vsub.s32 %v449, %v778
        %v780 = vrot.slane %v698, %v779
        %v781 = vsel %vm454, %v780, %v776
        %v782 = vlaneseq
        %v783 = vshrl.u32 %v782, 7
        %v784 = vsub.s32 %v456, %v783
        %v785 = vrot.slane %v699, %v784
        %v786 = vsel %vm461, %v785, %v781
        %v787 = vlaneseq
        %v788 = vshrl.u32 %v787, 7
        %v789 = vsub.s32 %v463, %v788
        %v790 = vrot.slane %v700, %v789
        %v791 = vsel %vm468, %v790, %v786
        %v792 = vlaneseq
        %v793 = vshrl.u32 %v792, 7
        %v794 = vsub.s32 %v470, %v793
        %v795 = vrot.slane %v701, %v794
        %v796 = vsel %vm475, %v795, %v791
        %798 = vst [vmem:[%s213] sm:$0x1] %v796
        %s799 = sand.u32 %s99, 1
        %s800 = scalar_lea.sflag [#allocation4], %s799
        %s801 = sand.u32 %s99, 1
        %s802 = scalar_lea.vmem [#allocation3], %s801
        %s803 = sand.u32 %s125, 1
        %s804 = scalar_lea.sflag [#allocation6], %s803
        %s805 = sand.u32 %s125, 1
        %s806 = scalar_lea.vmem [#allocation5], %s805
        // Predicated region
        $region33: #{tpu_custom_call.1} parent=31 // pred_check
          %p807 = pneg %p109
        $region34: #{tpu_custom_call.1} parent=31 // pred_check_branch
          %809 = sbr.rel (%p807) target = $region36
        $region35: #{tpu_custom_call.1} parent=31 // pred_region
          %s811 = ssub.s32 16, 16
          %812 = vsyncadd %s800, %s811
          %s813 = smul.addr %s23, 16
          %s814 = scalar_lea.hbm %s3, %s813
          %s816 = sshll.u32 %s802, 4
          %s817 = int_to_ptr.vmem [resolvable:$true] %s816
          %819 = dma.vmem_to_hbm [thread:$0]  %s817, 16, %s814, %s800
        $region36: #{tpu_custom_call.1} parent=31 // pred_fallthru
          _
        // Predicated region
        $region37: #{tpu_custom_call.1} parent=31 // pred_check
          %p820 = pneg %p135
        $region38: #{tpu_custom_call.1} parent=31 // pred_check_branch
          %822 = sbr.rel (%p820) target = $region40
        $region39: #{tpu_custom_call.1} parent=31 // pred_region
          %s824 = ssub.s32 16, 16
          %825 = vsyncadd %s804, %s824
          %s826 = smul.addr %s23, 16
          %s827 = scalar_lea.hbm %s4, %s826
          %s829 = sshll.u32 %s806, 4
          %s830 = int_to_ptr.vmem [resolvable:$true] %s829
          %832 = dma.vmem_to_hbm [thread:$0]  %s830, 16, %s827, %s804
        $region40: #{tpu_custom_call.1} parent=31 // pred_fallthru
          _
      $region32: #{tpu_custom_call.1} parent=5 // pred_fallthru
        _
      %p833 = scmp.le.s32.totalorder 2, %s18
      // Predicated region
      $region41: #{tpu_custom_call.1} parent=5 // pred_check
        %p834 = pneg %p833
      $region42: #{tpu_custom_call.1} parent=5 // pred_check_branch
        %836 = sbr.rel (%p834) target = $region44
      $region43: #{tpu_custom_call.1} parent=5 // pred_region
        %s837 = ssub.s32 %s18, 2
        // Predicated region
        $region45: #{tpu_custom_call.1} parent=43 // pred_check
          %p838 = pneg %p115
        $region46: #{tpu_custom_call.1} parent=43 // pred_check_branch
          %840 = sbr.rel (%p838) target = $region48
        $region47: #{tpu_custom_call.1} parent=43 // pred_region
          %s841 = sand.u32 %s100, 1
          %s842 = scalar_lea.sflag [#allocation4], %s841
          %s843 = sand.u32 %s100, 1
          %s844 = scalar_lea.vmem [#allocation3], %s843
          %845 = dma.done %s842, 16
        $region48: #{tpu_custom_call.1} parent=43 // pred_fallthru
          _
        // Predicated region
        $region49: #{tpu_custom_call.1} parent=43 // pred_check
          %p846 = pneg %p141
        $region50: #{tpu_custom_call.1} parent=43 // pred_check_branch
          %848 = sbr.rel (%p846) target = $region52
        $region51: #{tpu_custom_call.1} parent=43 // pred_region
          %s849 = sand.u32 %s126, 1
          %s850 = scalar_lea.sflag [#allocation6], %s849
          %s851 = sand.u32 %s126, 1
          %s852 = scalar_lea.vmem [#allocation5], %s851
          %853 = dma.done %s850, 16
        $region52: #{tpu_custom_call.1} parent=43 // pred_fallthru
          _
      $region44: #{tpu_custom_call.1} parent=5 // pred_fallthru
        _
    $region6: #{tpu_custom_call.1} parent=1 // loop_footer
      %s22 = sadd.s32 1, %s18
    $region7: #{tpu_custom_call.1} parent=1 // loop_footer_branch
      %17 = sbr.rel target = $region3
    $region8: #{tpu_custom_call.1} parent=1 // loop_exit
      _
    %854 = vsyncpa [#allocation4], 1
    %s855 = scalar_lea.sflag [#allocation4], 1
    %856 = vsyncpa %s855, 1
    %857 = vsyncpa [#allocation6], 1
    %s858 = scalar_lea.sflag [#allocation6], 1
    %859 = vsyncpa %s858, 1

</llo_original>
